<compile_context>
chip_gen: v7x
topology: tpu7x:2x2x1
jax: 0.10.0
libtpu: 0.0.40
codegen_flags: <defaults>
</compile_context>

<pallas_src>
import functools
import itertools

import jax
import jax.numpy as jnp
from jax.experimental import pallas as pl
from jax.experimental.pallas import tpu as pltpu


def _round_up(x, m):
    return ((x + m - 1) // m) * m


def _cdiv(a, b):
    return -(-a // b)


def afm_kernel(emb_ref, dense_ref, waug_ref, w2_ref, w3d_ref, scal_ref,
               o_ref, slab_ref, sc_ref, r_ref,
               *, pairs, chunk, att_dim, tb):
    """Batch-on-lanes AFM forward for one batch tile.

    emb_ref   : (F, E, TB)   bf16  sparse embeddings (batch on lanes)
    dense_ref : (D, TB)      bf16  dense features
    waug_ref  : (ATT+1, E+1) bf16  rows 0..ATT-1 = [w1 | b1], row ATT = [w3_embed^T | 0]
    w2_ref    : (ATT, 1)     f32
    w3d_ref   : (D, 1)       f32
    scal_ref  : (2,)         f32 (SMEM)  [b2, b3]
    o_ref     : (1, TB)      f32 sigmoid outputs (lane-dense)
    slab_ref  : (E+1, C*TB)  bf16 pair-product slab (RHS of the batched MXU dot)
    sc_ref    : (nchunks, C*TB) f32  attention-MLP score per pair
    r_ref     : (nchunks, C*TB) f32  per-pair  bi . w3_embed
    """
    f32 = jnp.float32
    _, E, _ = emb_ref.shape
    D = dense_ref.shape[0]
    ATT = att_dim
    C = chunk
    P = len(pairs)

    b2 = scal_ref[0]
    b3 = scal_ref[1]

    # Hoisted loop-invariant broadcast / weights (once per grid step).
    w2_b = jnp.broadcast_to(w2_ref[...], (ATT, C * tb))            # f32
    waug = waug_ref[...]                                           # (ATT+1, E+1) bf16
    # Constant ones-row so the attention-MLP bias b1 rides the MXU dot.
    slab_ref[E:E + 1, :] = jnp.ones((1, C * tb), slab_ref.dtype)

    m = jnp.full((1, tb), -jnp.inf, f32)                           # running softmax max

    # ---- Pass 1: pair bi-products, batched through one MXU dot per chunk ----
    chunks = [pairs[i:i + C] for i in range(0, P, C)]
    for c_idx, cpairs in enumerate(chunks):
        cn = len(cpairs)
        width = cn * tb
        for j, (f, s) in enumerate(cpairs):
            # bf16 elementwise product (native VPU on v6e/v7x); never retained.
            slab_ref[:E, j * tb:(j + 1) * tb] = emb_ref[f] * emb_ref[s]
        h_all = jnp.dot(waug, slab_ref[:, :width],
                        preferred_element_type=f32)                # (ATT+1, width)
        h = jnp.maximum(h_all[:ATT, :], 0.0)                       # ReLU(w1.bi + b1)
        sc = jnp.sum(h * w2_b[:, :width], axis=0, keepdims=True) + b2
        sc_ref[c_idx:c_idx + 1, :width] = sc
        r_ref[c_idx:c_idx + 1, :width] = h_all[ATT:ATT + 1, :]     # bi . w3_embed
        for j in range(cn):
            m = jnp.maximum(m, sc[:, j * tb:(j + 1) * tb])

    # ---- Pass 2: softmax over pairs fused with the attention-weighted sum ----
    # att_out . w3_embed == (sum_p exp(sc_p - m) * r_p) / (sum_p exp(sc_p - m))
    denom = jnp.zeros((1, tb), f32)
    num = jnp.zeros((1, tb), f32)
    for idx in range(P):
        c_idx, j = divmod(idx, C)
        col = slice(j * tb, (j + 1) * tb)
        e = jnp.exp(sc_ref[c_idx:c_idx + 1, col] - m)
        denom = denom + e
        num = num + e * r_ref[c_idx:c_idx + 1, col]

    # ---- dense part of the final linear + exact sigmoid ----
    dense = dense_ref[...].astype(f32)                             # (D, TB)
    w3d_b = jnp.broadcast_to(w3d_ref[...], (D, tb))
    logits = (jnp.sum(dense * w3d_b, axis=0, keepdims=True)
              + num * pl.reciprocal(denom, approx=True)            # approx only on softmax denom
              + b3)                                                # (1, TB)
    o_ref[...] = 1.0 / (1.0 + jnp.exp(-logits))                    # exact sigmoid


def afm_forward(dense_input, sparse_input, params, *, block_b=1024):
    """Wrapper: embedding gather + layout plumbing; all hot math in the kernel."""
    tables = params["embed_tables"]
    B, F = sparse_input.shape
    E = tables[0].shape[1]
    D = dense_input.shape[1]
    ATT = params["w1"].shape[0]

    # Gather once, then a single transpose to (F, E, B): batch lands on lanes.
    embeds = jnp.stack([tables[i][sparse_input[:, i]] for i in range(F)], axis=1)  # (B,F,E)
    emb = jnp.transpose(embeds, (1, 2, 0))                                          # (F,E,B)
    dense_t = dense_input.T                                                         # (D,B)

    pairs = tuple(itertools.combinations(range(F), 2))
    P = len(pairs)

    # Batch tile: lane-aligned and large (per-step overhead ~0.35us), but keep
    # >=2 grid tiles when the batch allows so both v7x TensorCores get work.
    tb = min(block_b, _round_up(B, 128))
    if B > 128:
        tb = min(tb, _round_up(_cdiv(B, 2), 128))
    b_pad = _round_up(B, tb)
    if b_pad != B:
        emb = jnp.pad(emb, ((0, 0), (0, 0), (0, b_pad - B)))
        dense_t = jnp.pad(dense_t, ((0, 0), (0, b_pad - B)))

    # Stream activations narrow; kernel keeps elementwise math bf16, accums f32.
    emb = emb.astype(jnp.bfloat16)
    dense_t = dense_t.astype(jnp.bfloat16)

    # Pair chunking: one (ATT+1, E+1) x (E+1, C*tb) bf16 MXU dot per chunk.
    C = max(1, min(P, 2048 // tb))
    nchunks = _cdiv(P, C)

    # Augmented attention weight: rows [w1 | b1], extra row [w3_embed^T | 0] so
    # the bias-add and the bi.w3_embed reduction both ride the (bf16) MXU dot.
    w_aug = jnp.concatenate([
        jnp.concatenate([params["w1"], params["b1"]], axis=1),
        jnp.concatenate([params["w3_embed"].T, jnp.zeros((1, 1), jnp.float32)], axis=1),
    ], axis=0).astype(jnp.bfloat16)                                  # (ATT+1, E+1)
    scalars = jnp.concatenate([params["b2"].reshape(-1),
                               params["b3"].reshape(-1)]).astype(jnp.float32)  # (2,)

    num_tiles = b_pad // tb
    kernel = functools.partial(afm_kernel, pairs=pairs, chunk=C, att_dim=ATT, tb=tb)
    const = lambda b: (0, 0)   # weights: fetched once, VMEM-resident across the grid

    # Explicit VMEM budget (re-derive per shapes; v7x has 64 MiB per core).
    vmem_bytes = (2 * (F * E * tb * 2 + D * tb * 2 + tb * 4)         # dbl-buffered blocks
                  + (E + 1) * C * tb * 2                              # pair-product slab
                  + 2 * _round_up(nchunks, 8) * C * tb * 4            # score / r scratch
                  + 64 * 1024)                                        # weights + slack
    vmem_limit = int(min(64 * 1024 * 1024, max(4 * 1024 * 1024, 2 * vmem_bytes)))

    out = pl.pallas_call(
        kernel,
        out_shape=jax.ShapeDtypeStruct((1, b_pad), jnp.float32),
        grid_spec=pltpu.PrefetchScalarGridSpec(
            num_scalar_prefetch=0,
            grid=(num_tiles,),
            in_specs=[
                pl.BlockSpec((F, E, tb), lambda b: (0, 0, b)),        # embeddings
                pl.BlockSpec((D, tb), lambda b: (0, b)),              # dense
                pl.BlockSpec((ATT + 1, E + 1), const),                # [w1|b1 ; w3e^T|0] bf16
                pl.BlockSpec((ATT, 1), const),                        # w2
                pl.BlockSpec((D, 1), const),                          # w3_dense
                pl.BlockSpec(memory_space=pltpu.MemorySpace.SMEM),    # [b2, b3] scalars
            ],
            out_specs=pl.BlockSpec((1, tb), lambda b: (0, b)),
            scratch_shapes=[
                pltpu.VMEM((E + 1, C * tb), jnp.bfloat16),            # bi slab (+ones row)
                pltpu.VMEM((nchunks, C * tb), jnp.float32),           # attention scores
                pltpu.VMEM((nchunks, C * tb), jnp.float32),           # bi . w3_embed
            ],
        ),
        compiler_params=pltpu.CompilerParams(
            dimension_semantics=("parallel",),
            vmem_limit_bytes=vmem_limit,
        ),
    )(emb, dense_t, w_aug, params["w2"], params["w3_dense"], scalars)

    return out[0, :B]   # matches torch .squeeze() -> (B,)


def afm_reference(dense_input, sparse_input, params, *, stream_dtype=jnp.bfloat16):
    """Pure-JAX reference (same bf16 input quantization as the kernel path)."""
    tables = params["embed_tables"]
    B, F = sparse_input.shape
    embeds = jnp.stack([tables[i][sparse_input[:, i]] for i in range(F)], axis=1)
    embeds = embeds.astype(stream_dtype).astype(jnp.float32)          # (B, F, E)
    dense = dense_input.astype(stream_dtype).astype(jnp.float32)      # (B, D)

    fi, si = zip(*itertools.combinations(range(F), 2))
    p = embeds[:, list(fi), :]
    q = embeds[:, list(si), :]
    bi = p * q                                                        # (B, P, E)

    h = jax.nn.relu(jnp.einsum('bpe,ae->bpa', bi, params["w1"]) + params["b1"][:, 0])
    s = jnp.einsum('bpa,a->bp', h, params["w2"][:, 0]) + params["b2"][0, 0]
    att = jax.nn.softmax(s, axis=1)                                   # (B, P)
    att_out = jnp.sum(att[:, :, None] * bi, axis=1)                   # (B, E)

    logits = dense @ params["w3_dense"] + att_out @ params["w3_embed"] + params["b3"]
    return jax.nn.sigmoid(logits)[:, 0]


if __name__ == "__main__":
    # Small, forward-consistent shapes
    B = 8            # batch
    D_DENSE = 4      # number of dense features
    F = 4            # number of sparse fields
    E = 16           # embed_dim
    ATT = 8          # att_dim
    FEAT_NUMS = [10, 20, 30, 15]   # vocab size per sparse field

    key = jax.random.PRNGKey(0)
    keys = jax.random.split(key, 12)

    params = {
        "embed_tables": [
            0.1 * jax.random.normal(keys[i], (FEAT_NUMS[i], E), jnp.float32)
            for i in range(F)
        ],
        # attention MLP: Linear(E, ATT) -> ReLU -> Linear(ATT, 1) -> Softmax(dim=1)
        "w1": 0.2 * jax.random.normal(keys[4], (ATT, E), jnp.float32),
        "b1": 0.1 * jax.random.normal(keys[5], (ATT, 1), jnp.float32),
        "w2": 0.2 * jax.random.normal(keys[6], (ATT, 1), jnp.float32),
        "b2": 0.1 * jax.random.normal(keys[7], (1, 1), jnp.float32),
        # final Linear(D_DENSE + E, 1), stored split for concat-free compute
        "w3_dense": 0.2 * jax.random.normal(keys[8], (D_DENSE, 1), jnp.float32),
        "w3_embed": 0.2 * jax.random.normal(keys[9], (E, 1), jnp.float32),
        "b3": 0.1 * jax.random.normal(keys[10], (1, 1), jnp.float32),
    }

    dense_input = jax.random.normal(keys[11], (B, D_DENSE), jnp.float32)
    sparse_input = jnp.stack(
        [jax.random.randint(jax.random.fold_in(key, 100 + i), (B,), 0, FEAT_NUMS[i])
         for i in range(F)], axis=1).astype(jnp.int32)

    out = afm_forward(dense_input, sparse_input, params)
    jax.block_until_ready(out)

    ref = afm_reference(dense_input, sparse_input, params)
    assert out.shape == (B,)
    assert jnp.allclose(out, ref, atol=1.5e-3, rtol=1.5e-3), (out, ref)

    print("KERNEL_OK")
</pallas_src>

<mosaic_0001>
module attributes {stable_mosaic.version = 11 : i64} {
  func.func @afm_kernel(%arg0: i32, %arg1: memref<4x16x128xbf16, #tpu.memory_space<vmem>>, %arg2: memref<4x128xbf16, #tpu.memory_space<vmem>>, %arg3: memref<9x17xbf16, #tpu.memory_space<vmem>>, %arg4: memref<8x1xf32, #tpu.memory_space<vmem>>, %arg5: memref<4x1xf32, #tpu.memory_space<vmem>>, %arg6: memref<2xf32, #tpu.memory_space<smem>>, %arg7: memref<1x128xf32, #tpu.memory_space<vmem>>, %arg8: memref<17x768xbf16, #tpu.memory_space<vmem>>, %arg9: memref<1x768xf32, #tpu.memory_space<vmem>>, %arg10: memref<1x768xf32, #tpu.memory_space<vmem>>) attributes {dimension_semantics = [#tpu.dimension_semantics<parallel>], iteration_bounds = array<i64: 1>, scalar_prefetch = 0 : i64, scratch_operands = 3 : i64, tpu.core_type = #tpu.core_type<tc>, window_params = [{transform_indices = @transform_0, window_bounds = array<i64: 4, 16, 128>}, {transform_indices = @transform_1, window_bounds = array<i64: 4, 128>}, {pipeline_mode = #tpu.pipeline_mode<synchronous>, transform_indices = @transform_2, window_bounds = array<i64: 9, 17>}, {pipeline_mode = #tpu.pipeline_mode<synchronous>, transform_indices = @transform_3, window_bounds = array<i64: 8, 1>}, {pipeline_mode = #tpu.pipeline_mode<synchronous>, transform_indices = @transform_4, window_bounds = array<i64: 4, 1>}, {transform_indices = @transform_5, window_bounds = array<i64: 2>}, {transform_indices = @transform_6, window_bounds = array<i64: 1, 128>}]} {
    %c0 = arith.constant 0 : index
    %0 = memref.load %arg6[%c0] : memref<2xf32, #tpu.memory_space<smem>>
    %c1 = arith.constant 1 : index
    %1 = memref.load %arg6[%c1] : memref<2xf32, #tpu.memory_space<smem>>
    %c0_0 = arith.constant 0 : index
    %c0_1 = arith.constant 0 : index
    %2 = vector.load %arg4[%c0_0, %c0_1] : memref<8x1xf32, #tpu.memory_space<vmem>>, vector<8x1xf32>
    %3 = vector.shape_cast %2 : vector<8x1xf32> to vector<8x1xf32>
    %4 = vector.broadcast %3 : vector<8x1xf32> to vector<8x768xf32>
    %c0_2 = arith.constant 0 : index
    %c0_3 = arith.constant 0 : index
    %5 = vector.load %arg3[%c0_2, %c0_3] : memref<9x17xbf16, #tpu.memory_space<vmem>>, vector<9x17xbf16>
    %cst = arith.constant 1.000000e+00 : bf16
    %6 = vector.broadcast %cst : bf16 to vector<1x768xbf16>
    %c16 = arith.constant 16 : index
    %c0_4 = arith.constant 0 : index
    %7 = vector.load %arg8[%c16, %c0_4] : memref<17x768xbf16, #tpu.memory_space<vmem>>, vector<1x768xbf16>
    tpu.vector_store %arg8[%c16, %c0_4], %6 {strides = array<i32>} : memref<17x768xbf16, #tpu.memory_space<vmem>>, vector<1x768xbf16>,
    %cst_5 = arith.constant 0xFF800000 : f32
    %8 = vector.broadcast %cst_5 : f32 to vector<1x128xf32>
    %c0_6 = arith.constant 0 : index
    %c0_7 = arith.constant 0 : index
    %c0_8 = arith.constant 0 : index
    %9 = vector.load %arg1[%c0_6, %c0_7, %c0_8] : memref<4x16x128xbf16, #tpu.memory_space<vmem>>, vector<1x16x128xbf16>
    %10 = vector.shape_cast %9 : vector<1x16x128xbf16> to vector<16x128xbf16>
    %c1_9 = arith.constant 1 : index
    %c0_10 = arith.constant 0 : index
    %c0_11 = arith.constant 0 : index
    %11 = vector.load %arg1[%c1_9, %c0_10, %c0_11] : memref<4x16x128xbf16, #tpu.memory_space<vmem>>, vector<1x16x128xbf16>
    %12 = vector.shape_cast %11 : vector<1x16x128xbf16> to vector<16x128xbf16>
    %13 = arith.mulf %10, %12 : vector<16x128xbf16>
    %c0_12 = arith.constant 0 : index
    %c0_13 = arith.constant 0 : index
    %14 = vector.load %arg8[%c0_12, %c0_13] : memref<17x768xbf16, #tpu.memory_space<vmem>>, vector<16x128xbf16>
    tpu.vector_store %arg8[%c0_12, %c0_13], %13 {strides = array<i32>} : memref<17x768xbf16, #tpu.memory_space<vmem>>, vector<16x128xbf16>,
    %c0_14 = arith.constant 0 : index
    %c0_15 = arith.constant 0 : index
    %c0_16 = arith.constant 0 : index
    %15 = vector.load %arg1[%c0_14, %c0_15, %c0_16] : memref<4x16x128xbf16, #tpu.memory_space<vmem>>, vector<1x16x128xbf16>
    %16 = vector.shape_cast %15 : vector<1x16x128xbf16> to vector<16x128xbf16>
    %c2 = arith.constant 2 : index
    %c0_17 = arith.constant 0 : index
    %c0_18 = arith.constant 0 : index
    %17 = vector.load %arg1[%c2, %c0_17, %c0_18] : memref<4x16x128xbf16, #tpu.memory_space<vmem>>, vector<1x16x128xbf16>
    %18 = vector.shape_cast %17 : vector<1x16x128xbf16> to vector<16x128xbf16>
    %19 = arith.mulf %16, %18 : vector<16x128xbf16>
    %c0_19 = arith.constant 0 : index
    %c128 = arith.constant 128 : index
    %20 = vector.load %arg8[%c0_19, %c128] : memref<17x768xbf16, #tpu.memory_space<vmem>>, vector<16x128xbf16>
    tpu.vector_store %arg8[%c0_19, %c128], %19 {strides = array<i32>} : memref<17x768xbf16, #tpu.memory_space<vmem>>, vector<16x128xbf16>,
    %c0_20 = arith.constant 0 : index
    %c0_21 = arith.constant 0 : index
    %c0_22 = arith.constant 0 : index
    %21 = vector.load %arg1[%c0_20, %c0_21, %c0_22] : memref<4x16x128xbf16, #tpu.memory_space<vmem>>, vector<1x16x128xbf16>
    %22 = vector.shape_cast %21 : vector<1x16x128xbf16> to vector<16x128xbf16>
    %c3 = arith.constant 3 : index
    %c0_23 = arith.constant 0 : index
    %c0_24 = arith.constant 0 : index
    %23 = vector.load %arg1[%c3, %c0_23, %c0_24] : memref<4x16x128xbf16, #tpu.memory_space<vmem>>, vector<1x16x128xbf16>
    %24 = vector.shape_cast %23 : vector<1x16x128xbf16> to vector<16x128xbf16>
    %25 = arith.mulf %22, %24 : vector<16x128xbf16>
    %c0_25 = arith.constant 0 : index
    %c256 = arith.constant 256 : index
    %26 = vector.load %arg8[%c0_25, %c256] : memref<17x768xbf16, #tpu.memory_space<vmem>>, vector<16x128xbf16>
    tpu.vector_store %arg8[%c0_25, %c256], %25 {strides = array<i32>} : memref<17x768xbf16, #tpu.memory_space<vmem>>, vector<16x128xbf16>,
    %c1_26 = arith.constant 1 : index
    %c0_27 = arith.constant 0 : index
    %c0_28 = arith.constant 0 : index
    %27 = vector.load %arg1[%c1_26, %c0_27, %c0_28] : memref<4x16x128xbf16, #tpu.memory_space<vmem>>, vector<1x16x128xbf16>
    %28 = vector.shape_cast %27 : vector<1x16x128xbf16> to vector<16x128xbf16>
    %c2_29 = arith.constant 2 : index
    %c0_30 = arith.constant 0 : index
    %c0_31 = arith.constant 0 : index
    %29 = vector.load %arg1[%c2_29, %c0_30, %c0_31] : memref<4x16x128xbf16, #tpu.memory_space<vmem>>, vector<1x16x128xbf16>
    %30 = vector.shape_cast %29 : vector<1x16x128xbf16> to vector<16x128xbf16>
    %31 = arith.mulf %28, %30 : vector<16x128xbf16>
    %c0_32 = arith.constant 0 : index
    %c384 = arith.constant 384 : index
    %32 = vector.load %arg8[%c0_32, %c384] : memref<17x768xbf16, #tpu.memory_space<vmem>>, vector<16x128xbf16>
    tpu.vector_store %arg8[%c0_32, %c384], %31 {strides = array<i32>} : memref<17x768xbf16, #tpu.memory_space<vmem>>, vector<16x128xbf16>,
    %c1_33 = arith.constant 1 : index
    %c0_34 = arith.constant 0 : index
    %c0_35 = arith.constant 0 : index
    %33 = vector.load %arg1[%c1_33, %c0_34, %c0_35] : memref<4x16x128xbf16, #tpu.memory_space<vmem>>, vector<1x16x128xbf16>
    %34 = vector.shape_cast %33 : vector<1x16x128xbf16> to vector<16x128xbf16>
    %c3_36 = arith.constant 3 : index
    %c0_37 = arith.constant 0 : index
    %c0_38 = arith.constant 0 : index
    %35 = vector.load %arg1[%c3_36, %c0_37, %c0_38] : memref<4x16x128xbf16, #tpu.memory_space<vmem>>, vector<1x16x128xbf16>
    %36 = vector.shape_cast %35 : vector<1x16x128xbf16> to vector<16x128xbf16>
    %37 = arith.mulf %34, %36 : vector<16x128xbf16>
    %c0_39 = arith.constant 0 : index
    %c512 = arith.constant 512 : index
    %38 = vector.load %arg8[%c0_39, %c512] : memref<17x768xbf16, #tpu.memory_space<vmem>>, vector<16x128xbf16>
    tpu.vector_store %arg8[%c0_39, %c512], %37 {strides = array<i32>} : memref<17x768xbf16, #tpu.memory_space<vmem>>, vector<16x128xbf16>,
    %c2_40 = arith.constant 2 : index
    %c0_41 = arith.constant 0 : index
    %c0_42 = arith.constant 0 : index
    %39 = vector.load %arg1[%c2_40, %c0_41, %c0_42] : memref<4x16x128xbf16, #tpu.memory_space<vmem>>, vector<1x16x128xbf16>
    %40 = vector.shape_cast %39 : vector<1x16x128xbf16> to vector<16x128xbf16>
    %c3_43 = arith.constant 3 : index
    %c0_44 = arith.constant 0 : index
    %c0_45 = arith.constant 0 : index
    %41 = vector.load %arg1[%c3_43, %c0_44, %c0_45] : memref<4x16x128xbf16, #tpu.memory_space<vmem>>, vector<1x16x128xbf16>
    %42 = vector.shape_cast %41 : vector<1x16x128xbf16> to vector<16x128xbf16>
    %43 = arith.mulf %40, %42 : vector<16x128xbf16>
    %c0_46 = arith.constant 0 : index
    %c640 = arith.constant 640 : index
    %44 = vector.load %arg8[%c0_46, %c640] : memref<17x768xbf16, #tpu.memory_space<vmem>>, vector<16x128xbf16>
    tpu.vector_store %arg8[%c0_46, %c640], %43 {strides = array<i32>} : memref<17x768xbf16, #tpu.memory_space<vmem>>, vector<16x128xbf16>,
    %c0_47 = arith.constant 0 : index
    %c0_48 = arith.constant 0 : index
    %45 = vector.load %arg8[%c0_47, %c0_48] : memref<17x768xbf16, #tpu.memory_space<vmem>>, vector<17x768xbf16>
    %cst_49 = arith.constant dense<0.000000e+00> : vector<9x768xf32>
    %46 = tpu.matmul %5, %45, %cst_49 {dimension_numbers = #tpu.dot_dimension_numbers<[1], [0], [0], [1], [0, 0, 1, 1], [], []>} : vector<9x17xbf16>, vector<17x768xbf16>, vector<9x768xf32> -> vector<9x768xf32>
    %47 = vector.extract_strided_slice %46 {offsets = [0, 0], sizes = [8, 768], strides = [1, 1]} : vector<9x768xf32> to vector<8x768xf32>
    %cst_50 = arith.constant 0.000000e+00 : f32
    %48 = vector.broadcast %cst_50 : f32 to vector<8x768xf32>
    %49 = arith.maximumf %47, %48 : vector<8x768xf32>
    %50 = arith.mulf %49, %4 : vector<8x768xf32>
    %cst_51 = arith.constant dense<0.000000e+00> : vector<768xf32>
    %51 = vector.multi_reduction <add>, %50, %cst_51 [0] : vector<8x768xf32> to vector<768xf32>
    %52 = vector.shape_cast %51 : vector<768xf32> to vector<1x768xf32>
    %53 = vector.broadcast %0 : f32 to vector<1x768xf32>
    %54 = arith.addf %52, %53 : vector<1x768xf32>
    %c0_52 = arith.constant 0 : index
    %c0_53 = arith.constant 0 : index
    %55 = vector.load %arg9[%c0_52, %c0_53] : memref<1x768xf32, #tpu.memory_space<vmem>>, vector<1x768xf32>
    tpu.vector_store %arg9[%c0_52, %c0_53], %54 {strides = array<i32>} : memref<1x768xf32, #tpu.memory_space<vmem>>, vector<1x768xf32>,
    %56 = vector.extract_strided_slice %46 {offsets = [8, 0], sizes = [1, 768], strides = [1, 1]} : vector<9x768xf32> to vector<1x768xf32>
    %c0_54 = arith.constant 0 : index
    %c0_55 = arith.constant 0 : index
    %57 = vector.load %arg10[%c0_54, %c0_55] : memref<1x768xf32, #tpu.memory_space<vmem>>, vector<1x768xf32>
    tpu.vector_store %arg10[%c0_54, %c0_55], %56 {strides = array<i32>} : memref<1x768xf32, #tpu.memory_space<vmem>>, vector<1x768xf32>,
    %58 = vector.extract_strided_slice %54 {offsets = [0, 0], sizes = [1, 128], strides = [1, 1]} : vector<1x768xf32> to vector<1x128xf32>
    %59 = arith.maximumf %8, %58 : vector<1x128xf32>
    %60 = vector.extract_strided_slice %54 {offsets = [0, 128], sizes = [1, 128], strides = [1, 1]} : vector<1x768xf32> to vector<1x128xf32>
    %61 = arith.maximumf %59, %60 : vector<1x128xf32>
    %62 = vector.extract_strided_slice %54 {offsets = [0, 256], sizes = [1, 128], strides = [1, 1]} : vector<1x768xf32> to vector<1x128xf32>
    %63 = arith.maximumf %61, %62 : vector<1x128xf32>
    %64 = vector.extract_strided_slice %54 {offsets = [0, 384], sizes = [1, 128], strides = [1, 1]} : vector<1x768xf32> to vector<1x128xf32>
    %65 = arith.maximumf %63, %64 : vector<1x128xf32>
    %66 = vector.extract_strided_slice %54 {offsets = [0, 512], sizes = [1, 128], strides = [1, 1]} : vector<1x768xf32> to vector<1x128xf32>
    %67 = arith.maximumf %65, %66 : vector<1x128xf32>
    %68 = vector.extract_strided_slice %54 {offsets = [0, 640], sizes = [1, 128], strides = [1, 1]} : vector<1x768xf32> to vector<1x128xf32>
    %69 = arith.maximumf %67, %68 : vector<1x128xf32>
    %cst_56 = arith.constant 0.000000e+00 : f32
    %70 = vector.broadcast %cst_56 : f32 to vector<1x128xf32>
    %cst_57 = arith.constant 0.000000e+00 : f32
    %71 = vector.broadcast %cst_57 : f32 to vector<1x128xf32>
    %c0_58 = arith.constant 0 : index
    %c0_59 = arith.constant 0 : index
    %72 = vector.load %arg9[%c0_58, %c0_59] : memref<1x768xf32, #tpu.memory_space<vmem>>, vector<1x128xf32>
    %73 = arith.subf %72, %69 : vector<1x128xf32>
    %74 = math.exp %73 : vector<1x128xf32>
    %75 = arith.addf %70, %74 : vector<1x128xf32>
    %c0_60 = arith.constant 0 : index
    %c0_61 = arith.constant 0 : index
    %76 = vector.load %arg10[%c0_60, %c0_61] : memref<1x768xf32, #tpu.memory_space<vmem>>, vector<1x128xf32>
    %77 = arith.mulf %74, %76 : vector<1x128xf32>
    %78 = arith.addf %71, %77 : vector<1x128xf32>
    %c0_62 = arith.constant 0 : index
    %c128_63 = arith.constant 128 : index
    %79 = vector.load %arg9[%c0_62, %c128_63] : memref<1x768xf32, #tpu.memory_space<vmem>>, vector<1x128xf32>
    %80 = arith.subf %79, %69 : vector<1x128xf32>
    %81 = math.exp %80 : vector<1x128xf32>
    %82 = arith.addf %75, %81 : vector<1x128xf32>
    %c0_64 = arith.constant 0 : index
    %c128_65 = arith.constant 128 : index
    %83 = vector.load %arg10[%c0_64, %c128_65] : memref<1x768xf32, #tpu.memory_space<vmem>>, vector<1x128xf32>
    %84 = arith.mulf %81, %83 : vector<1x128xf32>
    %85 = arith.addf %78, %84 : vector<1x128xf32>
    %c0_66 = arith.constant 0 : index
    %c256_67 = arith.constant 256 : index
    %86 = vector.load %arg9[%c0_66, %c256_67] : memref<1x768xf32, #tpu.memory_space<vmem>>, vector<1x128xf32>
    %87 = arith.subf %86, %69 : vector<1x128xf32>
    %88 = math.exp %87 : vector<1x128xf32>
    %89 = arith.addf %82, %88 : vector<1x128xf32>
    %c0_68 = arith.constant 0 : index
    %c256_69 = arith.constant 256 : index
    %90 = vector.load %arg10[%c0_68, %c256_69] : memref<1x768xf32, #tpu.memory_space<vmem>>, vector<1x128xf32>
    %91 = arith.mulf %88, %90 : vector<1x128xf32>
    %92 = arith.addf %85, %91 : vector<1x128xf32>
    %c0_70 = arith.constant 0 : index
    %c384_71 = arith.constant 384 : index
    %93 = vector.load %arg9[%c0_70, %c384_71] : memref<1x768xf32, #tpu.memory_space<vmem>>, vector<1x128xf32>
    %94 = arith.subf %93, %69 : vector<1x128xf32>
    %95 = math.exp %94 : vector<1x128xf32>
    %96 = arith.addf %89, %95 : vector<1x128xf32>
    %c0_72 = arith.constant 0 : index
    %c384_73 = arith.constant 384 : index
    %97 = vector.load %arg10[%c0_72, %c384_73] : memref<1x768xf32, #tpu.memory_space<vmem>>, vector<1x128xf32>
    %98 = arith.mulf %95, %97 : vector<1x128xf32>
    %99 = arith.addf %92, %98 : vector<1x128xf32>
    %c0_74 = arith.constant 0 : index
    %c512_75 = arith.constant 512 : index
    %100 = vector.load %arg9[%c0_74, %c512_75] : memref<1x768xf32, #tpu.memory_space<vmem>>, vector<1x128xf32>
    %101 = arith.subf %100, %69 : vector<1x128xf32>
    %102 = math.exp %101 : vector<1x128xf32>
    %103 = arith.addf %96, %102 : vector<1x128xf32>
    %c0_76 = arith.constant 0 : index
    %c512_77 = arith.constant 512 : index
    %104 = vector.load %arg10[%c0_76, %c512_77] : memref<1x768xf32, #tpu.memory_space<vmem>>, vector<1x128xf32>
    %105 = arith.mulf %102, %104 : vector<1x128xf32>
    %106 = arith.addf %99, %105 : vector<1x128xf32>
    %c0_78 = arith.constant 0 : index
    %c640_79 = arith.constant 640 : index
    %107 = vector.load %arg9[%c0_78, %c640_79] : memref<1x768xf32, #tpu.memory_space<vmem>>, vector<1x128xf32>
    %108 = arith.subf %107, %69 : vector<1x128xf32>
    %109 = math.exp %108 : vector<1x128xf32>
    %110 = arith.addf %103, %109 : vector<1x128xf32>
    %c0_80 = arith.constant 0 : index
    %c640_81 = arith.constant 640 : index
    %111 = vector.load %arg10[%c0_80, %c640_81] : memref<1x768xf32, #tpu.memory_space<vmem>>, vector<1x128xf32>
    %112 = arith.mulf %109, %111 : vector<1x128xf32>
    %113 = arith.addf %106, %112 : vector<1x128xf32>
    %c0_82 = arith.constant 0 : index
    %c0_83 = arith.constant 0 : index
    %114 = vector.load %arg2[%c0_82, %c0_83] : memref<4x128xbf16, #tpu.memory_space<vmem>>, vector<4x128xbf16>
    %115 = arith.extf %114 : vector<4x128xbf16> to vector<4x128xf32>
    %c0_84 = arith.constant 0 : index
    %c0_85 = arith.constant 0 : index
    %116 = vector.load %arg5[%c0_84, %c0_85] : memref<4x1xf32, #tpu.memory_space<vmem>>, vector<4x1xf32>
    %117 = vector.shape_cast %116 : vector<4x1xf32> to vector<4x1xf32>
    %118 = vector.broadcast %117 : vector<4x1xf32> to vector<4x128xf32>
    %119 = arith.mulf %115, %118 : vector<4x128xf32>
    %cst_86 = arith.constant dense<0.000000e+00> : vector<128xf32>
    %120 = vector.multi_reduction <add>, %119, %cst_86 [0] : vector<4x128xf32> to vector<128xf32>
    %121 = vector.shape_cast %120 : vector<128xf32> to vector<1x128xf32>
    %122 = tpu.reciprocal %110 {approx = true} : vector<1x128xf32> -> vector<1x128xf32>
    %123 = arith.mulf %113, %122 : vector<1x128xf32>
    %124 = arith.addf %121, %123 : vector<1x128xf32>
    %125 = vector.broadcast %1 : f32 to vector<1x128xf32>
    %126 = arith.addf %124, %125 : vector<1x128xf32>
    %cst_87 = arith.constant 0.000000e+00 : f32
    %127 = vector.broadcast %cst_87 : f32 to vector<1x128xf32>
    %128 = arith.subf %127, %126 : vector<1x128xf32>
    %129 = math.exp %128 : vector<1x128xf32>
    %cst_88 = arith.constant 1.000000e+00 : f32
    %130 = vector.broadcast %cst_88 : f32 to vector<1x128xf32>
    %131 = arith.addf %130, %129 : vector<1x128xf32>
    %cst_89 = arith.constant 1.000000e+00 : f32
    %132 = vector.broadcast %cst_89 : f32 to vector<1x128xf32>
    %133 = arith.divf %132, %131 : vector<1x128xf32>
    %c0_90 = arith.constant 0 : index
    %c0_91 = arith.constant 0 : index
    %134 = vector.load %arg7[%c0_90, %c0_91] : memref<1x128xf32, #tpu.memory_space<vmem>>, vector<1x128xf32>
    tpu.vector_store %arg7[%c0_90, %c0_91], %133 {strides = array<i32>} : memref<1x128xf32, #tpu.memory_space<vmem>>, vector<1x128xf32>,
    return
  }
  func.func @transform_0(%arg0: i32) -> (i32, i32, i32) {
    %c0_i32 = arith.constant 0 : i32
    %c0_i32_0 = arith.constant 0 : i32
    %c0_i32_1 = arith.constant 0 : i32
    return %c0_i32, %c0_i32_0, %arg0 : i32, i32, i32
  }
  func.func @transform_1(%arg0: i32) -> (i32, i32) {
    %c0_i32 = arith.constant 0 : i32
    %c0_i32_0 = arith.constant 0 : i32
    return %c0_i32, %arg0 : i32, i32
  }
  func.func @transform_2(%arg0: i32) -> (i32, i32) {
    %c0_i32 = arith.constant 0 : i32
    %c0_i32_0 = arith.constant 0 : i32
    %c0_i32_1 = arith.constant 0 : i32
    return %c0_i32, %c0_i32_0 : i32, i32
  }
  func.func @transform_3(%arg0: i32) -> (i32, i32) {
    %c0_i32 = arith.constant 0 : i32
    %c0_i32_0 = arith.constant 0 : i32
    %c0_i32_1 = arith.constant 0 : i32
    return %c0_i32, %c0_i32_0 : i32, i32
  }
  func.func @transform_4(%arg0: i32) -> (i32, i32) {
    %c0_i32 = arith.constant 0 : i32
    %c0_i32_0 = arith.constant 0 : i32
    %c0_i32_1 = arith.constant 0 : i32
    return %c0_i32, %c0_i32_0 : i32, i32
  }
  func.func @transform_5(%arg0: i32) -> i32 {
    %c0_i32 = arith.constant 0 : i32
    %c0_i32_0 = arith.constant 0 : i32
    return %c0_i32 : i32
  }
  func.func @transform_6(%arg0: i32) -> (i32, i32) {
    %c0_i32 = arith.constant 0 : i32
    %c0_i32_0 = arith.constant 0 : i32
    return %c0_i32, %arg0 : i32, i32
  }
}

</mosaic_0001>

<llo_original>
// kernel: tpu_custom_call.1
$region0: #{tpu_custom_call.1}
  #allocation0 [shape = 'u32[]', space=smem, size = 0x4, offset = 0x4, fixed_abs, tag = 'smem constant byte address 0x4 - core index']
  #allocation1 [shape = 'u32[144,128]{1,0:T(1,128)}', space=vmem, size = 0x12000, scoped, tag = 'internal scratch']
  #allocation2 [shape = 'bf16[17,768]{1,0:T(8,128)(2,1)}', space=vmem, size = 0x9000, scoped, tag = 'scratch operand']
  #allocation3 [shape = 'f32[1,768]{1,0:T(1,128)}', space=vmem, size = 0xc00, scoped, tag = 'scratch operand']
  #allocation4 [shape = 'f32[1,768]{1,0:T(1,128)}', space=vmem, size = 0xc00, scoped, tag = 'scratch operand']
  %s0 = inlined_call_operand.hbm [shape: bf16[4,16,128], index: 0, kind: input, shape index: {}]
  %s1 = inlined_call_operand.vmem [shape: bf16[4,128], index: 1, kind: input, shape index: {}]
  %s2 = inlined_call_operand.vmem [shape: bf16[9,17], index: 2, kind: input, shape index: {}]
  %s3 = inlined_call_operand.vmem [shape: f32[8,1], index: 3, kind: input, shape index: {}]
  %s4 = inlined_call_operand.vmem [shape: f32[4,1], index: 4, kind: input, shape index: {}]
  %s5 = inlined_call_operand.vmem [shape: f32[2], index: 5, kind: input, shape index: {}]
  %s6 = inlined_call_operand.hbm [shape: f32[1,128], index: 6, kind: output, shape index: {}]
  %s7 = sld [smem:[#allocation0]]
  $region42: #{tpu_custom_call.1} parent=0
    _
  %s9 = ssub.s32 1, %s7
  %s10 = scalar_select 0, %s9, %s7
  $region1: #{tpu_custom_call.1} parent=0
    #allocation5 [shape = 'u8[16384]{0}', space=vmem, size = 0x4000, scoped, tag = 'input window, operand 0, single buffered']
    #allocation6 [shape = 's32[1]{0}', space=sflag, size = 0x4, scoped, tag = 'scoped memory for tpu_custom_call.1']
    #allocation7 [shape = 's32[1]{0}', space=sflag, size = 0x4, scoped, tag = 'scoped memory for tpu_custom_call.1']
    #allocation8 [shape = 's32[1]{0}', space=sflag, size = 0x4, scoped, tag = 'scoped memory for tpu_custom_call.1']
    #allocation9 [shape = 'u8[512]{0}', space=smem, size = 0x200, scoped, tag = 'input window, operand 5, single buffered']
    #allocation10 [shape = 'u8[512]{0}', space=vmem, size = 0x400, scoped, tag = 'output window, operand 0, single buffered']
    %11 = vsyncpa [#allocation6], 0
    %12 = vsyncpa [#allocation8], 0
    %13 = vsyncpa [#allocation7], 0
    // Predicated region
    $region2: #{tpu_custom_call.1} parent=1 // pred_check
      _
    $region3: #{tpu_custom_call.1} parent=1 // pred_check_branch
      %15 = sbr.rel (0) target = $region5
    $region4: #{tpu_custom_call.1} parent=1 // pred_region
      %s17 = ssub.s32 512, 512
      %18 = vsyncadd [#allocation6], %s17
      %s19 = sshll.u32 [#allocation5], 4
      %s20 = int_to_ptr.vmem [resolvable:$true] %s19
      %25 = dma.hbm_to_vmem [thread:$0]  %s0, 512, %s20, [#allocation6], 64, 64, 4
    $region5: #{tpu_custom_call.1} parent=1 // pred_fallthru
      _
    // Predicated region
    $region6: #{tpu_custom_call.1} parent=1 // pred_check
      _
    $region7: #{tpu_custom_call.1} parent=1 // pred_check_branch
      %27 = sbr.rel (0) target = $region9
    $region8: #{tpu_custom_call.1} parent=1 // pred_region
      _
    $region9: #{tpu_custom_call.1} parent=1 // pred_fallthru
      _
    // Predicated region
    $region10: #{tpu_custom_call.1} parent=1 // pred_check
      _
    $region11: #{tpu_custom_call.1} parent=1 // pred_check_branch
      %29 = sbr.rel (0) target = $region13
    $region12: #{tpu_custom_call.1} parent=1 // pred_region
      _
    $region13: #{tpu_custom_call.1} parent=1 // pred_fallthru
      _
    // Predicated region
    $region14: #{tpu_custom_call.1} parent=1 // pred_check
      _
    $region15: #{tpu_custom_call.1} parent=1 // pred_check_branch
      %31 = sbr.rel (0) target = $region17
    $region16: #{tpu_custom_call.1} parent=1 // pred_region
      _
    $region17: #{tpu_custom_call.1} parent=1 // pred_fallthru
      _
    // Predicated region
    $region18: #{tpu_custom_call.1} parent=1 // pred_check
      _
    $region19: #{tpu_custom_call.1} parent=1 // pred_check_branch
      %33 = sbr.rel (0) target = $region21
    $region20: #{tpu_custom_call.1} parent=1 // pred_region
      _
    $region21: #{tpu_custom_call.1} parent=1 // pred_fallthru
      _
    // Predicated region
    $region22: #{tpu_custom_call.1} parent=1 // pred_check
      _
    $region23: #{tpu_custom_call.1} parent=1 // pred_check_branch
      %35 = sbr.rel (0) target = $region25
    $region24: #{tpu_custom_call.1} parent=1 // pred_region
      %s37 = ssub.s32 16, 16
      %38 = vsyncadd [#allocation8], %s37
      %s40 = sshll.u32 %s5, 4
      %s41 = int_to_ptr.vmem [resolvable:$true] %s40
      %43 = dma.vmem_to_smem %s41, 16, [#allocation9], [#allocation8]
    $region25: #{tpu_custom_call.1} parent=1 // pred_fallthru
      _
    // Predicated region
    $region26: #{tpu_custom_call.1} parent=1 // pred_check
      _
    $region27: #{tpu_custom_call.1} parent=1 // pred_check_branch
      %45 = sbr.rel (0) target = $region29
    $region28: #{tpu_custom_call.1} parent=1 // pred_region
      %46 = dma.done [#allocation6], 512
    $region29: #{tpu_custom_call.1} parent=1 // pred_fallthru
      _
    // Predicated region
    $region30: #{tpu_custom_call.1} parent=1 // pred_check
      _
    $region31: #{tpu_custom_call.1} parent=1 // pred_check_branch
      %48 = sbr.rel (0) target = $region33
    $region32: #{tpu_custom_call.1} parent=1 // pred_region
      %49 = dma.done [#allocation8], 16
    $region33: #{tpu_custom_call.1} parent=1 // pred_fallthru
      _
    %50 = sfence
    %s53 = sld [smem:[#allocation9]]
    %s54 = sld [smem:[#allocation9 + $0x1]]
    %v55 = vld [vmem:[%s3] sm:$0xff]
    %57 = vset.pattern.permute.xlu0 0
    %58 = vperm.xlu0 %57, %v55
    %v59 = vpop.permute.xlu0 %58
    %v61 = vld [vmem:[%s2] sm:$0xf]
    %v62 = vld [vmem:[%s2 + $0x4] sm:$0x1]
    %vm63 = vcmask 1040384
    %vm64 = vsmask.f32 256
    %vm65 = vmand %vm63, %vm64
    %vm66 = vcmask 1044484
    %vm67 = vsmask.f32 4352
    %vm68 = vmand %vm66, %vm67
    %vm69 = vmor %vm68, %vm65
    %v70 = vld [vmem:[#allocation2 + $0x30] sm:$0x11]
    %v71 = vsel %vm69, 1065369472, %v70
    %72 = vst [vmem:[#allocation2 + $0x30] sm:$0x11] %v71
    %v73 = vld [vmem:[#allocation2 + $0x38] sm:$0x11]
    %v74 = vsel %vm69, 1065369472, %v73
    %75 = vst [vmem:[#allocation2 + $0x38] sm:$0x11] %v74
    %v76 = vld [vmem:[#allocation2 + $0x40] sm:$0x11]
    %v77 = vsel %vm69, 1065369472, %v76
    %78 = vst [vmem:[#allocation2 + $0x40] sm:$0x11] %v77
    %v79 = vld [vmem:[#allocation5] sm:$0xf]
    %v80 = vld [vmem:[#allocation5 + $0x4] sm:$0xf]
    %s81 = scalar_lea.vmem [#allocation5], 8
    %v82 = vld [vmem:[%s81] sm:$0xf]
    %v83 = vld [vmem:[%s81 + $0x4] sm:$0xf]
    %v84 = vmul.bf16 %v79, %v82
    %v85 = vmul.bf16 %v80, %v83
    %86 = vst [vmem:[#allocation2] sm:$0xf] %v84
    %87 = vst [vmem:[#allocation2 + $0x18] sm:$0xf] %v85
    %v88 = vld [vmem:[#allocation5] sm:$0xf]
    %v89 = vld [vmem:[#allocation5 + $0x4] sm:$0xf]
    %s90 = scalar_lea.vmem [#allocation5], 16
    %v91 = vld [vmem:[%s90] sm:$0xf]
    %v92 = vld [vmem:[%s90 + $0x4] sm:$0xf]
    %v93 = vmul.bf16 %v88, %v91
    %v94 = vmul.bf16 %v89, %v92
    %95 = vst [vmem:[#allocation2 + $0x4] sm:$0xf] %v93
    %96 = vst [vmem:[#allocation2 + $0x1c] sm:$0xf] %v94
    %v97 = vld [vmem:[#allocation5] sm:$0xf]
    %v98 = vld [vmem:[#allocation5 + $0x4] sm:$0xf]
    %s99 = scalar_lea.vmem [#allocation5], 24
    %v100 = vld [vmem:[%s99] sm:$0xf]
    %v101 = vld [vmem:[%s99 + $0x4] sm:$0xf]
    %v102 = vmul.bf16 %v97, %v100
    %v103 = vmul.bf16 %v98, %v101
    %104 = vst [vmem:[#allocation2 + $0x8] sm:$0xf] %v102
    %105 = vst [vmem:[#allocation2 + $0x20] sm:$0xf] %v103
    %v106 = vld [vmem:[%s81] sm:$0xf]
    %v107 = vld [vmem:[%s81 + $0x4] sm:$0xf]
    %v108 = vld [vmem:[%s90] sm:$0xf]
    %v109 = vld [vmem:[%s90 + $0x4] sm:$0xf]
    %v110 = vmul.bf16 %v106, %v108
    %v111 = vmul.bf16 %v107, %v109
    %112 = vst [vmem:[#allocation2 + $0xc] sm:$0xf] %v110
    %113 = vst [vmem:[#allocation2 + $0x24] sm:$0xf] %v111
    %v114 = vld [vmem:[%s81] sm:$0xf]
    %v115 = vld [vmem:[%s81 + $0x4] sm:$0xf]
    %v116 = vld [vmem:[%s99] sm:$0xf]
    %v117 = vld [vmem:[%s99 + $0x4] sm:$0xf]
    %v118 = vmul.bf16 %v114, %v116
    %v119 = vmul.bf16 %v115, %v117
    %120 = vst [vmem:[#allocation2 + $0x10] sm:$0xf] %v118
    %121 = vst [vmem:[#allocation2 + $0x28] sm:$0xf] %v119
    %v122 = vld [vmem:[%s90] sm:$0xf]
    %v123 = vld [vmem:[%s90 + $0x4] sm:$0xf]
    %v124 = vld [vmem:[%s99] sm:$0xf]
    %v125 = vld [vmem:[%s99 + $0x4] sm:$0xf]
    %v126 = vmul.bf16 %v122, %v124
    %v127 = vmul.bf16 %v123, %v125
    %128 = vst [vmem:[#allocation2 + $0x14] sm:$0xf] %v126
    %129 = vst [vmem:[#allocation2 + $0x2c] sm:$0xf] %v127
    %v130 = vld [vmem:[#allocation2] sm:$0xff]
    %v131 = vld [vmem:[#allocation2 + $0x8] sm:$0xff]
    %v132 = vld [vmem:[#allocation2 + $0x10] sm:$0xff]
    %v133 = vld [vmem:[#allocation2 + $0x18] sm:$0xff]
    %v134 = vld [vmem:[#allocation2 + $0x20] sm:$0xff]
    %v135 = vld [vmem:[#allocation2 + $0x28] sm:$0xff]
    %v136 = vld [vmem:[#allocation2 + $0x30] sm:$0x11]
    %v137 = vld [vmem:[#allocation2 + $0x38] sm:$0x11]
    %v138 = vld [vmem:[#allocation2 + $0x40] sm:$0x11]
    %v141 = vunpack.c.l.b16 %v61
    %v142 = vunpack.c.l.b16 %v62
    %v143 = vpack.c.b16 %v142, %v141
    %v153 = vunpack.c.l.b16 %v130
    %v154 = vunpack.c.h.b16 %v130
    %v155 = vunpack.c.l.b16 %v131
    %v156 = vunpack.c.h.b16 %v131
    %v157 = vunpack.c.l.b16 %v132
    %v158 = vunpack.c.h.b16 %v132
    %v159 = vunpack.c.l.b16 %v133
    %v160 = vunpack.c.h.b16 %v133
    %v161 = vunpack.c.l.b16 %v134
    %v162 = vunpack.c.h.b16 %v134
    %v163 = vunpack.c.l.b16 %v135
    %v164 = vunpack.c.h.b16 %v135
    %v165 = vunpack.c.l.b16 %v136
    %v166 = vunpack.c.h.b16 %v136
    %v167 = vunpack.c.l.b16 %v137
    %v168 = vunpack.c.h.b16 %v137
    %v169 = vunpack.c.l.b16 %v138
    %v170 = vunpack.c.h.b16 %v138
    %v171 = vpack.c.b16 %v159, %v153
    %v172 = vpack.c.b16 %v160, %v154
    %v173 = vpack.c.b16 %v161, %v155
    %v174 = vpack.c.b16 %v162, %v156
    %v175 = vpack.c.b16 %v163, %v157
    %v176 = vpack.c.b16 %v164, %v158
    %v177 = vpack.c.b16 %v165, %v165
    %v178 = vpack.c.b16 %v166, %v166
    %v179 = vpack.c.b16 %v167, %v167
    %v180 = vpack.c.b16 %v168, %v168
    %v181 = vpack.c.b16 %v169, %v169
    %v182 = vpack.c.b16 %v170, %v170
    %vm189 = vcmask 138240
    %v191 = vsel %vm189, %v143, 0
    %vm193 = vcmask 1040384
    %v194 = vsel 0, 4294967295, 65535
    %v195 = vsel %vm193, %v194, 0
    %v197 = vand.u32 %v177, %v195
    %v200 = vand.u32 %v178, %v195
    %v203 = vand.u32 %v179, %v195
    %v206 = vand.u32 %v180, %v195
    %v209 = vand.u32 %v181, %v195
    %v212 = vand.u32 %v182, %v195
    %214 = vmatprep.subr.bf16.mxu0 %v172
    %215 = vmatpush1.bf16.msra.mxu0 %v171
    %216 = vmatprep.subr.bf16.mxu0 %v200
    %217 = vmatpush1.bf16.msra.mxu0 %v197
    %218 = vmatprep.subr.bf16.mxu0 0
    %219 = vmatpush1.bf16.msra.mxu0 0
    %220 = vmatprep.subr.bf16.mxu0 0
    %221 = vmatpush1.bf16.msra.mxu0 0
    %222 = vmatprep.subr.bf16.mxu0 0
    %223 = vmatpush1.bf16.msra.mxu0 0
    %224 = vmatprep.subr.bf16.mxu0 0
    %225 = vmatpush1.bf16.msra.mxu0 0
    %226 = vmatprep.subr.bf16.mxu0 0
    %227 = vmatpush1.bf16.msra.mxu0 0
    %228 = vmatprep.subr.bf16.mxu0 0
    %229 = vmatpush1.bf16.msra.mxu0 0
    %230 = vmatprep.subr.bf16.mxu0 0
    %231 = vmatpush1.bf16.msra.mxu0 0
    %232 = vmatprep.subr.bf16.mxu0 0
    %233 = vmatpush1.bf16.msra.mxu0 0
    %234 = vmatprep.subr.bf16.mxu0 0
    %235 = vmatpush1.bf16.msra.mxu0 0
    %236 = vmatprep.subr.bf16.mxu0 0
    %237 = vmatpush1.bf16.msra.mxu0 0
    %238 = vmatprep.subr.bf16.mxu0 0
    %239 = vmatpush1.bf16.msra.mxu0 0
    %240 = vmatprep.subr.bf16.mxu0 0
    %241 = vmatpush1.bf16.msra.mxu0 0
    %242 = vmatprep.subr.bf16.mxu0 0
    %243 = vmatpush1.bf16.msra.mxu0 0
    %244 = vmatprep.subr.bf16.mxu0 0
    %245 = vmatpush1.bf16.msra.mxu0 0
    %246 = vmatprep.mubr.bf16.mxu0 0
    %247 = vmatmul.mubr.bf16.gmra.mrb[0].mxu0 %v191
    %v248 = vpop.f32.mrb[0].mxu0
    %v249 = vadd.f32 0.0, %v248
    %v250 = vpop.f32.mrb[0].mxu0
    %v251 = vadd.f32 0.0, %v250
    %v252 = vpop.f32.mrb[0].mxu0
    %v253 = vadd.f32 0.0, %v252
    %v254 = vpop.f32.mrb[0].mxu0
    %v255 = vadd.f32 0.0, %v254
    %256 = vdwg.mxu0
    %257 = vmatprep.subr.bf16.mxu0 %v174
    %258 = vmatpush1.bf16.msra.mxu0 %v173
    %259 = vmatprep.subr.bf16.mxu0 %v206
    %260 = vmatpush1.bf16.msra.mxu0 %v203
    %261 = vmatprep.subr.bf16.mxu0 0
    %262 = vmatpush1.bf16.msra.mxu0 0
    %263 = vmatprep.subr.bf16.mxu0 0
    %264 = vmatpush1.bf16.msra.mxu0 0
    %265 = vmatprep.subr.bf16.mxu0 0
    %266 = vmatpush1.bf16.msra.mxu0 0
    %267 = vmatprep.subr.bf16.mxu0 0
    %268 = vmatpush1.bf16.msra.mxu0 0
    %269 = vmatprep.subr.bf16.mxu0 0
    %270 = vmatpush1.bf16.msra.mxu0 0
    %271 = vmatprep.subr.bf16.mxu0 0
    %272 = vmatpush1.bf16.msra.mxu0 0
    %273 = vmatprep.subr.bf16.mxu0 0
    %274 = vmatpush1.bf16.msra.mxu0 0
    %275 = vmatprep.subr.bf16.mxu0 0
    %276 = vmatpush1.bf16.msra.mxu0 0
    %277 = vmatprep.subr.bf16.mxu0 0
    %278 = vmatpush1.bf16.msra.mxu0 0
    %279 = vmatprep.subr.bf16.mxu0 0
    %280 = vmatpush1.bf16.msra.mxu0 0
    %281 = vmatprep.subr.bf16.mxu0 0
    %282 = vmatpush1.bf16.msra.mxu0 0
    %283 = vmatprep.subr.bf16.mxu0 0
    %284 = vmatpush1.bf16.msra.mxu0 0
    %285 = vmatprep.subr.bf16.mxu0 0
    %286 = vmatpush1.bf16.msra.mxu0 0
    %287 = vmatprep.subr.bf16.mxu0 0
    %288 = vmatpush1.bf16.msra.mxu0 0
    %289 = vmatprep.mubr.bf16.mxu0 0
    %290 = vmatmul.mubr.bf16.gmra.mrb[0].mxu0 %v191
    %v291 = vpop.f32.mrb[0].mxu0
    %v292 = vadd.f32 0.0, %v291
    %v293 = vpop.f32.mrb[0].mxu0
    %v294 = vadd.f32 0.0, %v293
    %v295 = vpop.f32.mrb[0].mxu0
    %v296 = vadd.f32 0.0, %v295
    %v297 = vpop.f32.mrb[0].mxu0
    %v298 = vadd.f32 0.0, %v297
    %299 = vdwg.mxu0
    %300 = vmatprep.subr.bf16.mxu0 %v176
    %301 = vmatpush1.bf16.msra.mxu0 %v175
    %302 = vmatprep.subr.bf16.mxu0 %v212
    %303 = vmatpush1.bf16.msra.mxu0 %v209
    %304 = vmatprep.subr.bf16.mxu0 0
    %305 = vmatpush1.bf16.msra.mxu0 0
    %306 = vmatprep.subr.bf16.mxu0 0
    %307 = vmatpush1.bf16.msra.mxu0 0
    %308 = vmatprep.subr.bf16.mxu0 0
    %309 = vmatpush1.bf16.msra.mxu0 0
    %310 = vmatprep.subr.bf16.mxu0 0
    %311 = vmatpush1.bf16.msra.mxu0 0
    %312 = vmatprep.subr.bf16.mxu0 0
    %313 = vmatpush1.bf16.msra.mxu0 0
    %314 = vmatprep.subr.bf16.mxu0 0
    %315 = vmatpush1.bf16.msra.mxu0 0
    %316 = vmatprep.subr.bf16.mxu0 0
    %317 = vmatpush1.bf16.msra.mxu0 0
    %318 = vmatprep.subr.bf16.mxu0 0
    %319 = vmatpush1.bf16.msra.mxu0 0
    %320 = vmatprep.subr.bf16.mxu0 0
    %321 = vmatpush1.bf16.msra.mxu0 0
    %322 = vmatprep.subr.bf16.mxu0 0
    %323 = vmatpush1.bf16.msra.mxu0 0
    %324 = vmatprep.subr.bf16.mxu0 0
    %325 = vmatpush1.bf16.msra.mxu0 0
    %326 = vmatprep.subr.bf16.mxu0 0
    %327 = vmatpush1.bf16.msra.mxu0 0
    %328 = vmatprep.subr.bf16.mxu0 0
    %329 = vmatpush1.bf16.msra.mxu0 0
    %330 = vmatprep.subr.bf16.mxu0 0
    %331 = vmatpush1.bf16.msra.mxu0 0
    %332 = vmatprep.mubr.bf16.mxu0 0
    %333 = vmatmul.mubr.bf16.gmra.mrb[0].mxu0 %v191
    %v334 = vpop.f32.mrb[0].mxu0
    %v335 = vadd.f32 0.0, %v334
    %v336 = vpop.f32.mrb[0].mxu0
    %v337 = vadd.f32 0.0, %v336
    %v338 = vpop.f32.mrb[0].mxu0
    %v339 = vadd.f32 0.0, %v338
    %v340 = vpop.f32.mrb[0].mxu0
    %v341 = vadd.f32 0.0, %v340
    %342 = vdwg.mxu0
    %v343 = vmax.f32 %v249, 0.0
    %v344 = vmax.f32 %v251, 0.0
    %v345 = vmax.f32 %v292, 0.0
    %v346 = vmax.f32 %v294, 0.0
    %v347 = vmax.f32 %v335, 0.0
    %v348 = vmax.f32 %v337, 0.0
    %v349 = vmul.f32 %v343, %v59
    %v350 = vmul.f32 %v344, %v59
    %v351 = vmul.f32 %v345, %v59
    %v352 = vmul.f32 %v346, %v59
    %v353 = vmul.f32 %v347, %v59
    %v354 = vmul.f32 %v348, %v59
    %v355 = vrot.slane %v349, 4
    %v356 = vadd.f32 %v349, %v355
    %v357 = vrot.slane %v356, 2
    %v358 = vadd.f32 %v356, %v357
    %v359 = vrot.slane %v358, 1
    %v360 = vadd.f32 %v358, %v359
    %v361 = vrot.slane %v350, 4
    %v362 = vadd.f32 %v350, %v361
    %v363 = vrot.slane %v362, 2
    %v364 = vadd.f32 %v362, %v363
    %v365 = vrot.slane %v364, 1
    %v366 = vadd.f32 %v364, %v365
    %v367 = vrot.slane %v351, 4
    %v368 = vadd.f32 %v351, %v367
    %v369 = vrot.slane %v368, 2
    %v370 = vadd.f32 %v368, %v369
    %v371 = vrot.slane %v370, 1
    %v372 = vadd.f32 %v370, %v371
    %v373 = vrot.slane %v352, 4
    %v374 = vadd.f32 %v352, %v373
    %v375 = vrot.slane %v374, 2
    %v376 = vadd.f32 %v374, %v375
    %v377 = vrot.slane %v376, 1
    %v378 = vadd.f32 %v376, %v377
    %v379 = vrot.slane %v353, 4
    %v380 = vadd.f32 %v353, %v379
    %v381 = vrot.slane %v380, 2
    %v382 = vadd.f32 %v380, %v381
    %v383 = vrot.slane %v382, 1
    %v384 = vadd.f32 %v382, %v383
    %v385 = vrot.slane %v354, 4
    %v386 = vadd.f32 %v354, %v385
    %v387 = vrot.slane %v386, 2
    %v388 = vadd.f32 %v386, %v387
    %v389 = vrot.slane %v388, 1
    %v390 = vadd.f32 %v388, %v389
    %v391 = vstv %s53
    %v392 = vadd.f32 %v360, %v391
    %v393 = vadd.f32 %v366, %v391
    %v394 = vadd.f32 %v372, %v391
    %v395 = vadd.f32 %v378, %v391
    %v396 = vadd.f32 %v384, %v391
    %v397 = vadd.f32 %v390, %v391
    %v404 = vcombine.low %v392, %v393
    %v405 = vcombine.low %v394, %v395
    %v406 = vcombine.low %v396, %v397
    %v408 = vunpack.c.l.s4 1966171168
    %v409 = vunpack.c.0.s8 %v408
    %v410 = vlaneseq
    %v411 = vshrl.u32 %v410, 7
    %v412 = vsub.s32 %v409, %v411
    %v413 = vrot.slane %v404, %v412
    %v415 = vunpack.c.l.s4 1966171168
    %v416 = vunpack.c.0.s8 %v415
    %v417 = vlaneseq
    %v418 = vshrl.u32 %v417, 7
    %v419 = vsub.s32 %v416, %v418
    %v420 = vrot.slane %v405, %v419
    %v422 = vunpack.c.l.s4 1966171168
    %v423 = vunpack.c.0.s8 %v422
    %v424 = vlaneseq
    %v425 = vshrl.u32 %v424, 7
    %v426 = vsub.s32 %v423, %v425
    %v427 = vrot.slane %v406, %v426
    %v428 = vcombine.low %v413, %v420
    %v430 = vunpack.c.l.s4 1966171168
    %v431 = vunpack.c.0.s8 %v430
    %v432 = vlaneseq
    %v433 = vshrl.u32 %v432, 7
    %v434 = vsub.s32 %v431, %v433
    %v435 = vrot.slane %v428, %v434
    %v437 = vunpack.c.l.s4 1966171168
    %v438 = vunpack.c.0.s8 %v437
    %v439 = vlaneseq
    %v440 = vshrl.u32 %v439, 7
    %v441 = vsub.s32 %v438, %v440
    %v442 = vrot.slane %v427, %v441
    %v443 = vcombine.low %v435, %v442
    %v445 = vlaneseq
    %vm446 = vcmp.ge.s32.totalorder %v445, 0
    %vm447 = vcmp.lt.s32.totalorder %v445, 768
    %vm448 = vmand %vm446, %vm447
    %449 = vst.msk [vmem:[#allocation3] sm:$0x3f] %vm448, %v443
    %v456 = vcombine.low %v253, %v255
    %v457 = vcombine.low %v296, %v298
    %v458 = vcombine.low %v339, %v341
    %v460 = vunpack.c.l.s4 1966171168
    %v461 = vunpack.c.0.s8 %v460
    %v462 = vlaneseq
    %v463 = vshrl.u32 %v462, 7
    %v464 = vsub.s32 %v461, %v463
    %v465 = vrot.slane %v456, %v464
    %v467 = vunpack.c.l.s4 1966171168
    %v468 = vunpack.c.0.s8 %v467
    %v469 = vlaneseq
    %v470 = vshrl.u32 %v469, 7
    %v471 = vsub.s32 %v468, %v470
    %v472 = vrot.slane %v457, %v471
    %v474 = vunpack.c.l.s4 1966171168
    %v475 = vunpack.c.0.s8 %v474
    %v476 = vlaneseq
    %v477 = vshrl.u32 %v476, 7
    %v478 = vsub.s32 %v475, %v477
    %v479 = vrot.slane %v458, %v478
    %v480 = vcombine.low %v465, %v472
    %v482 = vunpack.c.l.s4 1966171168
    %v483 = vunpack.c.0.s8 %v482
    %v484 = vlaneseq
    %v485 = vshrl.u32 %v484, 7
    %v486 = vsub.s32 %v483, %v485
    %v487 = vrot.slane %v480, %v486
    %v489 = vunpack.c.l.s4 1966171168
    %v490 = vunpack.c.0.s8 %v489
    %v491 = vlaneseq
    %v492 = vshrl.u32 %v491, 7
    %v493 = vsub.s32 %v490, %v492
    %v494 = vrot.slane %v479, %v493
    %v495 = vcombine.low %v487, %v494
    %497 = vst.msk [vmem:[#allocation4] sm:$0x3f] %vm448, %v495
    %v498 = vmax.f32 %v392, %v393
    %v499 = vmax.f32 %v498, %v394
    %v500 = vmax.f32 %v499, %v395
    %v501 = vmax.f32 %v500, %v396
    %v502 = vmax.f32 %v501, %v397
    %v503 = vld [vmem:[#allocation3] sm:$0x1]
    %v504 = vsub.f32 %v503, %v502
    %v505 = vmul.f32 %v504, 1.442695
    %v506 = vpow.pop %v505
    %v507 = vadd.f32 %v506, 0.0
    %v508 = vld [vmem:[#allocation4] sm:$0x1]
    %v509 = vmul.f32 %v506, %v508
    %v510 = vadd.f32 %v509, 0.0
    %v511 = vld [vmem:[#allocation3 + $0x1] sm:$0x1]
    %v512 = vsub.f32 %v511, %v502
    %v513 = vmul.f32 %v512, 1.442695
    %v514 = vpow.pop %v513
    %v515 = vadd.f32 %v507, %v514
    %v516 = vld [vmem:[#allocation4 + $0x1] sm:$0x1]
    %v517 = vmul.f32 %v514, %v516
    %v518 = vadd.f32 %v510, %v517
    %v519 = vld [vmem:[#allocation3 + $0x2] sm:$0x1]
    %v520 = vsub.f32 %v519, %v502
    %v521 = vmul.f32 %v520, 1.442695
    %v522 = vpow.pop %v521
    %v523 = vadd.f32 %v515, %v522
    %v524 = vld [vmem:[#allocation4 + $0x2] sm:$0x1]
    %v525 = vmul.f32 %v522, %v524
    %v526 = vadd.f32 %v518, %v525
    %v527 = vld [vmem:[#allocation3 + $0x3] sm:$0x1]
    %v528 = vsub.f32 %v527, %v502
    %v529 = vmul.f32 %v528, 1.442695
    %v530 = vpow.pop %v529
    %v531 = vadd.f32 %v523, %v530
    %v532 = vld [vmem:[#allocation4 + $0x3] sm:$0x1]
    %v533 = vmul.f32 %v530, %v532
    %v534 = vadd.f32 %v526, %v533
    %v535 = vld [vmem:[#allocation3 + $0x4] sm:$0x1]
    %v536 = vsub.f32 %v535, %v502
    %v537 = vmul.f32 %v536, 1.442695
    %v538 = vpow.pop %v537
    %v539 = vadd.f32 %v531, %v538
    %v540 = vld [vmem:[#allocation4 + $0x4] sm:$0x1]
    %v541 = vmul.f32 %v538, %v540
    %v542 = vadd.f32 %v534, %v541
    %v543 = vld [vmem:[#allocation3 + $0x5] sm:$0x1]
    %v544 = vsub.f32 %v543, %v502
    %v545 = vmul.f32 %v544, 1.442695
    %v546 = vpow.pop %v545
    %v547 = vadd.f32 %v539, %v546
    %v548 = vld [vmem:[#allocation4 + $0x5] sm:$0x1]
    %v549 = vmul.f32 %v546, %v548
    %v550 = vadd.f32 %v542, %v549
    %v551 = vld [vmem:[%s1] sm:$0x3]
    %v552 = vunpack.c.l.bf16 %v551
    %v553 = vld [vmem:[%s4] sm:$0xf]
    %555 = vset.pattern.permute.xlu0 0
    %556 = vperm.xlu0 %555, %v553
    %v557 = vpop.permute.xlu0 %556
    %v559 = vmul.f32 %v552, %v557
    %vm560 = vcmask 1043456
    %v561 = vsel %vm560, %v559, 0.0
    %v562 = vrot.slane %v561, 4
    %v563 = vadd.f32 %v561, %v562
    %v564 = vrot.slane %v563, 2
    %v565 = vadd.f32 %v563, %v564
    %v566 = vrot.slane %v565, 1
    %v567 = vadd.f32 %v565, %v566
    %v568 = vrcp.pop %v547
    %v569 = vmul.f32 %v550, %v568
    %v570 = vadd.f32 %v567, %v569
    %v571 = vstv %s54
    %v572 = vadd.f32 %v570, %v571
    %v573 = vsub.f32 0.0, %v572
    %v574 = vmul.f32 %v573, 1.442695
    %v575 = vpow.pop %v574
    %v576 = vadd.f32 %v575, 1.0
    %v577 = vrcp.pop %v576
    %v578 = vmul.f32 1.0, %v577
    %579 = vst [vmem:[#allocation10] sm:$0x1] %v578
    // Predicated region
    $region34: #{tpu_custom_call.1} parent=1 // pred_check
      _
    $region35: #{tpu_custom_call.1} parent=1 // pred_check_branch
      %581 = sbr.rel (0) target = $region37
    $region36: #{tpu_custom_call.1} parent=1 // pred_region
      %s583 = ssub.s32 16, 16
      %584 = vsyncadd [#allocation7], %s583
      %s586 = sshll.u32 [#allocation10], 4
      %s587 = int_to_ptr.vmem [resolvable:$true] %s586
      %589 = dma.vmem_to_hbm [thread:$0]  %s587, 16, %s6, [#allocation7]
    $region37: #{tpu_custom_call.1} parent=1 // pred_fallthru
      _
    // Predicated region
    $region38: #{tpu_custom_call.1} parent=1 // pred_check
      _
    $region39: #{tpu_custom_call.1} parent=1 // pred_check_branch
      %591 = sbr.rel (0) target = $region41
    $region40: #{tpu_custom_call.1} parent=1 // pred_region
      %592 = dma.done [#allocation7], 16
    $region41: #{tpu_custom_call.1} parent=1 // pred_fallthru
      _
    %593 = vsyncpa [#allocation6], 1
    %594 = vsyncpa [#allocation7], 1
    %595 = vsyncpa [#allocation8], 1

</llo_original>
